<compile_context>
chip_gen: v5e
topology: v5e:2x2
jax: 0.10.0
libtpu: 0.0.40
codegen_flags: <defaults>
</compile_context>

<pallas_src>
import functools
import math

import jax
import jax.numpy as jnp
from jax import lax
from jax.experimental import pallas as pl
from jax.experimental.pallas import tpu as pltpu


def _round_up(x, m):
    return ((x + m - 1) // m) * m


# ----------------------------------------------------------------------------
# Recurrence kernels: grid = (batch_blocks, time_chunks), h/c carried in VMEM
# ----------------------------------------------------------------------------

def _rnn_seq_kernel(x_ref, feats_ref, wfp_ref, bfp_ref, wx_ref, wh_ref, b_ref,
                    h_out_ref, xp_sc, h_sc, *, Tc, Nsb, unroll):
    tci = pl.program_id(1)   # time-chunk index (sequential axis)

    @pl.when(tci == 0)
    def _():                 # h0 = feats @ Wfp + bfp  (feat_proj folded in)
        h_sc[...] = (jnp.dot(feats_ref[...], wfp_ref[...],
                             preferred_element_type=jnp.float32)
                     + bfp_ref[...])

    # Input projection for the whole time chunk: one big bf16 MXU matmul.
    xw = (jnp.dot(x_ref[...].reshape(Tc * Nsb, x_ref.shape[-1]), wx_ref[...],
                  preferred_element_type=jnp.float32) + b_ref[...])
    xp_sc[...] = xw.reshape(xp_sc.shape)

    def step(t, h):
        a = xp_sc[t] + jnp.dot(h.astype(jnp.bfloat16), wh_ref[...],
                               preferred_element_type=jnp.float32)
        nh = jnp.tanh(a)
        h_out_ref[t] = nh.astype(h_out_ref.dtype)
        return nh

    h_sc[...] = lax.fori_loop(0, Tc, step, h_sc[...], unroll=unroll)


def _lstm_seq_kernel(x_ref, feats_ref, wfp_ref, bfp_ref, wx_ref, wh_ref, b_ref,
                     h_out_ref, xp_sc, h_sc, c_sc, *, Tc, Nsb, Hp, unroll):
    tci = pl.program_id(1)

    @pl.when(tci == 0)
    def _():
        h_sc[...] = (jnp.dot(feats_ref[...], wfp_ref[...],
                             preferred_element_type=jnp.float32)
                     + bfp_ref[...])
        c_sc[...] = jnp.zeros(c_sc.shape, jnp.float32)

    xw = (jnp.dot(x_ref[...].reshape(Tc * Nsb, x_ref.shape[-1]), wx_ref[...],
                  preferred_element_type=jnp.float32) + b_ref[...])
    xp_sc[...] = xw.reshape(xp_sc.shape)

    def step(t, carry):
        h, c = carry
        a = xp_sc[t] + jnp.dot(h.astype(jnp.bfloat16), wh_ref[...],
                               preferred_element_type=jnp.float32)
        # Hp is a multiple of 128 -> gate slices are lane-aligned (no relayout)
        i = jax.nn.sigmoid(a[:, 0:Hp])
        f = jax.nn.sigmoid(a[:, Hp:2 * Hp])
        o = jax.nn.sigmoid(a[:, 2 * Hp:3 * Hp])
        g = jnp.tanh(a[:, 3 * Hp:4 * Hp])
        nc = f * c + i * g
        nh = o * jnp.tanh(nc)
        h_out_ref[t] = nh.astype(h_out_ref.dtype)
        return nh, nc

    nh, nc = lax.fori_loop(0, Tc, step, (h_sc[...], c_sc[...]), unroll=unroll)
    h_sc[...] = nh
    c_sc[...] = nc


def _choose_time_chunk(T, Nsb, Dp, Hp, gates, budget_bytes, max_tc=32):
    best = 1
    for tc in range(1, min(T, max_tc) + 1):
        if T % tc:
            continue
        foot = (2 * tc * Nsb * Dp * 2        # x chunk, double-buffered, bf16
                + 2 * tc * Nsb * Hp * 2      # h_out chunk, double-buffered, bf16
                + tc * Nsb * gates * Hp * 4)  # xp scratch, f32
        if foot <= budget_bytes:
            best = tc
    return best


def recurrence_pallas(x3, feats, Wfp, bfp, Wx, Wh, b, cell_type, n_bb):
    """x3: (T, Nb, Dp) bf16 word vectors; feats: (Nb, Fp) bf16.
    Returns hidden states (T, Nb, Hp) bf16."""
    T, Nb, Dp = x3.shape
    Nsb = Nb // n_bb
    Fp = feats.shape[1]
    Hp = Wfp.shape[1]
    gates = 4 if cell_type == 'lstm' else 1
    gHp = gates * Hp

    # chunk the time axis so the working set stays well inside 64 MiB (v7x)
    Tc = _choose_time_chunk(T, Nsb, Dp, Hp, gates, budget_bytes=24 << 20)
    n_tc = T // Tc
    unroll = True if Tc <= 16 else 4

    if cell_type == 'lstm':
        kern = functools.partial(_lstm_seq_kernel, Tc=Tc, Nsb=Nsb, Hp=Hp,
                                 unroll=unroll)
        scratch = [pltpu.VMEM((Tc, Nsb, gHp), jnp.float32),
                   pltpu.VMEM((Nsb, Hp), jnp.float32),
                   pltpu.VMEM((Nsb, Hp), jnp.float32)]
    else:
        kern = functools.partial(_rnn_seq_kernel, Tc=Tc, Nsb=Nsb,
                                 unroll=unroll)
        scratch = [pltpu.VMEM((Tc, Nsb, gHp), jnp.float32),
                   pltpu.VMEM((Nsb, Hp), jnp.float32)]

    # explicit scoped-VMEM budget from the actual block / scratch footprint
    foot = (2 * Tc * Nsb * Dp * 2 + 2 * Tc * Nsb * Hp * 2
            + 2 * Nsb * Fp * 2
            + 2 * (Fp * Hp + Dp * gHp + Hp * gHp) * 2
            + 2 * (Hp + gHp) * 4
            + Tc * Nsb * gHp * 4
            + (2 if cell_type == 'lstm' else 1) * Nsb * Hp * 4)
    vmem_limit = int(min(96 << 20, max(2 * foot, 32 << 20)))

    return pl.pallas_call(
        kern,
        out_shape=jax.ShapeDtypeStruct((T, Nb, Hp), jnp.bfloat16),
        grid=(n_bb, n_tc),
        in_specs=[
            pl.BlockSpec((Tc, Nsb, Dp), lambda bb, tc: (tc, bb, 0)),
            pl.BlockSpec((Nsb, Fp), lambda bb, tc: (bb, 0)),
            pl.BlockSpec((Fp, Hp), lambda bb, tc: (0, 0)),
            pl.BlockSpec((1, Hp), lambda bb, tc: (0, 0)),
            pl.BlockSpec((Dp, gHp), lambda bb, tc: (0, 0)),
            pl.BlockSpec((Hp, gHp), lambda bb, tc: (0, 0)),
            pl.BlockSpec((1, gHp), lambda bb, tc: (0, 0)),
        ],
        out_specs=pl.BlockSpec((Tc, Nsb, Hp), lambda bb, tc: (tc, bb, 0)),
        scratch_shapes=scratch,
        compiler_params=pltpu.CompilerParams(
            dimension_semantics=("parallel", "arbitrary"),
            vmem_limit_bytes=vmem_limit),
    )(x3, feats, Wfp, bfp, Wx, Wh, b)


# ----------------------------------------------------------------------------
# Vocab projection + temporal softmax loss, online logsumexp over vocab tiles
# ----------------------------------------------------------------------------

def _loss_kernel(h_ref, w_ref, b_ref, y_ref, out_ref, m_sc, l_sc, ts_sc, *,
                 tm, tv, ignore_index):
    j = pl.program_id(1)   # vocab-tile index (reduction axis, sequential)

    @pl.when(j == 0)
    def _():
        m_sc[...] = jnp.full((tm, 1), -jnp.inf, jnp.float32)
        l_sc[...] = jnp.zeros((tm, 1), jnp.float32)
        ts_sc[...] = jnp.zeros((tm, 1), jnp.float32)

    scores = (jnp.dot(h_ref[...], w_ref[...],
                      preferred_element_type=jnp.float32) + b_ref[...])  # (tm, tv)
    y = y_ref[...]                                                       # (tm, 1)

    # true-class score: fold the tile offset into the scalar label side
    y_loc = y - j * tv
    col = lax.broadcasted_iota(jnp.int32, (tm, tv), 1)
    ts_sc[...] += jnp.sum(jnp.where(col == y_loc, scores, 0.0),
                          axis=-1, keepdims=True)

    # online logsumexp over vocab tiles
    m_prev = m_sc[...]
    m_new = jnp.maximum(m_prev, jnp.max(scores, axis=-1, keepdims=True))
    l_sc[...] = (l_sc[...] * jnp.exp(m_prev - m_new)
                 + jnp.sum(jnp.exp(scores - m_new), axis=-1, keepdims=True))
    m_sc[...] = m_new

    @pl.when(j == pl.num_programs(1) - 1)
    def _():
        per = m_sc[...] + jnp.log(l_sc[...]) - ts_sc[...]
        valid = y >= 0                       # padded rows (y == -1)
        if ignore_index is not None:
            valid = jnp.logical_and(valid, y != ignore_index)
        per = jnp.where(valid, per, 0.0)
        # one lane-dense partial sum per row tile (no (NT,1) per-token store)
        out_ref[...] = jnp.broadcast_to(jnp.sum(per), (1, 1, 128))


def temporal_softmax_loss_pallas(h_flat, Wout, bout, y_flat, n_batch,
                                 ignore_index, tv):
    NT, Hp = h_flat.shape
    Vp = Wout.shape[1]
    assert Vp % tv == 0

    # row tile: grow it (cuts Wout HBM re-streaming) and pad NT to a multiple
    # of it instead of searching for a divisor
    tm = 512 if NT > 512 else _round_up(max(NT, 8), 8)
    NT_pad = _round_up(NT, tm)
    if NT_pad != NT:
        h_flat = jnp.pad(h_flat, ((0, NT_pad - NT), (0, 0)))
        y_flat = jnp.pad(y_flat, (0, NT_pad - NT), constant_values=-1)
    y2d = y_flat.reshape(NT_pad, 1).astype(jnp.int32)
    n_row_tiles = NT_pad // tm

    foot = (2 * tm * Hp * 2 + 2 * Hp * tv * 2 + 2 * tv * 4 + 2 * tm * 4
            + 2 * 128 * 4 + 3 * tm * 4 + 2 * tm * tv * 4)
    vmem_limit = int(min(96 << 20, max(2 * foot, 32 << 20)))

    partial = pl.pallas_call(
        functools.partial(_loss_kernel, tm=tm, tv=tv,
                          ignore_index=ignore_index),
        out_shape=jax.ShapeDtypeStruct((n_row_tiles, 1, 128), jnp.float32),
        grid=(n_row_tiles, Vp // tv),
        in_specs=[
            pl.BlockSpec((tm, Hp), lambda i, j: (i, 0)),
            pl.BlockSpec((Hp, tv), lambda i, j: (0, j)),
            pl.BlockSpec((1, tv), lambda i, j: (0, j)),
            pl.BlockSpec((tm, 1), lambda i, j: (i, 0)),
        ],
        out_specs=pl.BlockSpec((1, 1, 128), lambda i, j: (i, 0, 0)),
        scratch_shapes=[pltpu.VMEM((tm, 1), jnp.float32)] * 3,
        compiler_params=pltpu.CompilerParams(
            dimension_semantics=("parallel", "arbitrary"),
            vmem_limit_bytes=vmem_limit),
    )(h_flat, Wout, bout, y2d)

    # tiny (n_row_tiles,) reduction + batch normalization in XLA glue
    return jnp.sum(partial[:, 0, 0]) / n_batch


# ----------------------------------------------------------------------------
# CaptioningRNN (JAX / Pallas)
# ----------------------------------------------------------------------------

class CaptioningRNNPallas:
    def __init__(self, word_to_idx, input_dim=512, wordvec_dim=128,
                 hidden_dim=128, cell_type='rnn', ignore_index=None,
                 key=jax.random.PRNGKey(0)):
        if cell_type not in {'rnn', 'lstm'}:
            raise ValueError('Invalid cell_type "%s"' % cell_type)
        self.cell_type = cell_type
        self.word_to_idx = word_to_idx
        self.ignore_index = ignore_index
        self.hidden_dim = hidden_dim
        self.wordvec_dim = wordvec_dim
        self.input_dim = input_dim
        V = len(word_to_idx)
        self.vocab_size = V
        gates = 4 if cell_type == 'lstm' else 1
        self.gates = gates

        ks = jax.random.split(key, 9)
        H, D, F = hidden_dim, wordvec_dim, input_dim
        # ---- raw f32 parameters (match the torch module's init) ----
        self.Wx = (jax.random.normal(ks[0], (D, H * gates), jnp.float32)
                   / math.sqrt(D))
        self.Wh = (jax.random.normal(ks[1], (H, H * gates), jnp.float32)
                   / math.sqrt(H))
        self.b = jnp.zeros((H * gates,), jnp.float32)
        bd = 1.0 / math.sqrt(H)
        self.Wout = jax.random.uniform(ks[2], (H, V), jnp.float32, -bd, bd)
        self.bout = jax.random.uniform(ks[3], (V,), jnp.float32, -bd, bd)
        self.W_embed = (jax.random.normal(ks[4], (V, D), jnp.float32)
                        / math.sqrt(V))
        bd2 = 1.0 / math.sqrt(F)
        self.Wfp = jax.random.uniform(ks[5], (F, H), jnp.float32, -bd2, bd2)
        self.bfp = jax.random.uniform(ks[6], (H,), jnp.float32, -bd2, bd2)
        # TODO(synk): pretrained MobileNetV2 feature extractor has no in-script
        # Pallas equivalent; replaced with a deterministic global-average-pool
        # + fixed random projection to input_dim.
        self.W_fx = (jax.random.normal(ks[7], (3, F), jnp.float32)
                     / math.sqrt(3.0))

        # ---- lane-dense (128-padded), bf16 kernel-side copies ----
        Dp = _round_up(D, 128)
        Hp = _round_up(H, 128)
        Fp = _round_up(F, 128)
        Vp0 = _round_up(V, 128)
        tv = min(Vp0, 2048)                      # vocab tile for the loss
        Vp = _round_up(Vp0, tv)
        self.Dp, self.Hp, self.Fp, self.Vp, self.tv = Dp, Hp, Fp, Vp, tv

        def _pad2(a, rows, cols):
            return jnp.pad(a, ((0, rows - a.shape[0]), (0, cols - a.shape[1])))

        def _pad_gatecols(w, rows_to):
            # (rows, gates*H) -> (rows_to, gates*Hp), each gate block padded
            r = w.shape[0]
            w3 = w.reshape(r, gates, H)
            w3 = jnp.pad(w3, ((0, rows_to - r), (0, 0), (0, Hp - H)))
            return w3.reshape(rows_to, gates * Hp)

        self.Wx_p = _pad_gatecols(self.Wx, Dp).astype(jnp.bfloat16)
        self.Wh_p = _pad_gatecols(self.Wh, Hp).astype(jnp.bfloat16)
        self.b_p = jnp.pad(self.b.reshape(gates, H),
                           ((0, 0), (0, Hp - H))).reshape(1, gates * Hp)
        self.Wfp_p = _pad2(self.Wfp, Fp, Hp).astype(jnp.bfloat16)
        self.bfp_p = jnp.pad(self.bfp, (0, Hp - H)).reshape(1, Hp)
        self.W_embed_p = _pad2(self.W_embed, V, Dp).astype(jnp.bfloat16)
        self.Wout_p = _pad2(self.Wout, Hp, Vp).astype(jnp.bfloat16)
        # padded vocab columns get a very negative bias so they can never win
        # the running max nor contribute to the softmax sum
        self.bout_p = (jnp.full((Vp,), -1e30, jnp.float32)
                       .at[:V].set(self.bout).reshape(1, Vp))

    def _extract_features(self, images):
        # images: (N, 3, H, W) NCHW -> (N, input_dim)
        pooled = jnp.mean(images, axis=(2, 3))     # (N, 3)
        return pooled @ self.W_fx                  # (N, F) f32

    # ---------------- Pallas forward ----------------
    def forward(self, images, captions):
        captions_in = captions[:, :-1]             # (N, T)
        captions_out = captions[:, 1:]             # (N, T)
        N = images.shape[0]
        T = captions_in.shape[1]

        # batch padded to 8 sublanes; to 16 when big enough to split across
        # the two v7x TensorCores (parallel leading grid axis)
        if N >= 16:
            Nb, n_bb = _round_up(N, 16), 2
        else:
            Nb, n_bb = _round_up(N, 8), 1
        pad_n = Nb - N

        # only the tiny int caption tensor is transposed/padded on the host;
        # word vectors are gathered directly in (T, Nb, Dp) bf16
        cap_in_t = jnp.pad(captions_in.T, ((0, 0), (0, pad_n)))      # (T, Nb)
        x3 = self.W_embed_p[cap_in_t]                                # gather glue
        feats = self._extract_features(images)                       # glue
        feats = jnp.pad(feats, ((0, pad_n), (0, self.Fp - self.input_dim)))
        feats = feats.astype(jnp.bfloat16)                           # (Nb, Fp)

        h3 = recurrence_pallas(x3, feats, self.Wfp_p, self.bfp_p,
                               self.Wx_p, self.Wh_p, self.b_p,
                               self.cell_type, n_bb)                 # (T,Nb,Hp) bf16

        h_flat = h3.reshape(T * Nb, self.Hp)
        y = jnp.pad(captions_out.T, ((0, 0), (0, pad_n)),
                    constant_values=-1).reshape(-1)                  # (T*Nb,)
        return temporal_softmax_loss_pallas(h_flat, self.Wout_p, self.bout_p,
                                            y, N, self.ignore_index, self.tv)

    # ---------------- pure-JAX reference ----------------
    # Matmuls use the same bf16-operand / f32-accumulate precision as the
    # Pallas kernels so the correctness check isolates kernel mechanics.
    def forward_reference(self, images, captions):
        def mm(a, w):
            return jnp.dot(a.astype(jnp.bfloat16), w.astype(jnp.bfloat16),
                           preferred_element_type=jnp.float32)

        captions_in = captions[:, :-1]
        captions_out = captions[:, 1:]
        feats = self._extract_features(images)
        h0 = mm(feats, self.Wfp) + self.bfp
        x = self.W_embed[captions_in]
        H = self.hidden_dim
        xs = jnp.transpose(x, (1, 0, 2))
        if self.cell_type == 'rnn':
            def step(h, xt):
                nh = jnp.tanh(mm(xt, self.Wx) + mm(h, self.Wh) + self.b)
                return nh, nh
            _, hs = lax.scan(step, h0, xs)
        else:
            def step(carry, xt):
                h, c = carry
                A = mm(xt, self.Wx) + mm(h, self.Wh) + self.b
                i = jax.nn.sigmoid(A[:, 0:H])
                f = jax.nn.sigmoid(A[:, H:2 * H])
                o = jax.nn.sigmoid(A[:, 2 * H:3 * H])
                g = jnp.tanh(A[:, 3 * H:4 * H])
                c = f * c + i * g
                h = o * jnp.tanh(c)
                return (h, c), h
            _, hs = lax.scan(step, (h0, jnp.zeros_like(h0)), xs)
        hn = jnp.transpose(hs, (1, 0, 2))
        Nn, T, _ = hn.shape
        scores = mm(hn.reshape(Nn * T, H), self.Wout) + self.bout
        logp = jax.nn.log_softmax(scores, axis=-1)
        y = captions_out.reshape(-1)
        nll = -logp[jnp.arange(Nn * T), y]
        if self.ignore_index is not None:
            nll = jnp.where(y != self.ignore_index, nll, 0.0)
        return jnp.sum(nll) / Nn


# ----------------------------------------------------------------------------

if __name__ == "__main__":
    key = jax.random.PRNGKey(0)
    N = 2
    T_plus_1 = 9          # captions are (N, T+1); T = 8 timesteps
    V = 16                # vocab size
    input_dim, wordvec_dim, hidden_dim = 64, 32, 32
    img_hw = 16

    word_to_idx = {'<NULL>': 0, '<START>': 1, '<END>': 2}
    for i in range(3, V):
        word_to_idx['w%d' % i] = i

    k_img, k_cap = jax.random.split(key)
    images = jax.random.normal(k_img, (N, 3, img_hw, img_hw), jnp.float32)
    captions = jax.random.randint(k_cap, (N, T_plus_1), 0, V).astype(jnp.int32)

    for cell in ('rnn', 'lstm'):
        model = CaptioningRNNPallas(
            word_to_idx, input_dim=input_dim, wordvec_dim=wordvec_dim,
            hidden_dim=hidden_dim, cell_type=cell, ignore_index=0,
            key=jax.random.PRNGKey(42))
        loss = jax.block_until_ready(model.forward(images, captions))
        ref = model.forward_reference(images, captions)
        err = abs(float(loss) - float(ref))
        assert err < 2e-3 * max(1.0, abs(float(ref))), (cell, float(loss),
                                                        float(ref))
    print("KERNEL_OK")
</pallas_src>

<mosaic_0001>
module attributes {stable_mosaic.version = 11 : i64} {
  func.func @_rnn_seq_kernel(%arg0: i32, %arg1: i32, %arg2: memref<8x8x128xbf16, #tpu.memory_space<vmem>>, %arg3: memref<8x128xbf16, #tpu.memory_space<vmem>>, %arg4: memref<128x128xbf16, #tpu.memory_space<vmem>>, %arg5: memref<1x128xf32, #tpu.memory_space<vmem>>, %arg6: memref<128x128xbf16, #tpu.memory_space<vmem>>, %arg7: memref<128x128xbf16, #tpu.memory_space<vmem>>, %arg8: memref<1x128xf32, #tpu.memory_space<vmem>>, %arg9: memref<8x8x128xbf16, #tpu.memory_space<vmem>>, %arg10: memref<8x8x128xf32, #tpu.memory_space<vmem>>, %arg11: memref<8x128xf32, #tpu.memory_space<vmem>>) attributes {dimension_semantics = [#tpu.dimension_semantics<parallel>, #tpu.dimension_semantics<arbitrary>], iteration_bounds = array<i64: 1, 1>, scalar_prefetch = 0 : i64, scratch_operands = 2 : i64, tpu.core_type = #tpu.core_type<tc>, window_params = [{transform_indices = @transform_0, window_bounds = array<i64: 8, 8, 128>}, {transform_indices = @transform_1, window_bounds = array<i64: 8, 128>}, {pipeline_mode = #tpu.pipeline_mode<synchronous>, transform_indices = @transform_2, window_bounds = array<i64: 128, 128>}, {pipeline_mode = #tpu.pipeline_mode<synchronous>, transform_indices = @transform_3, window_bounds = array<i64: 1, 128>}, {pipeline_mode = #tpu.pipeline_mode<synchronous>, transform_indices = @transform_4, window_bounds = array<i64: 128, 128>}, {pipeline_mode = #tpu.pipeline_mode<synchronous>, transform_indices = @transform_5, window_bounds = array<i64: 128, 128>}, {pipeline_mode = #tpu.pipeline_mode<synchronous>, transform_indices = @transform_6, window_bounds = array<i64: 1, 128>}, {transform_indices = @transform_7, window_bounds = array<i64: 8, 8, 128>}]} {
    %c0_i32 = arith.constant 0 : i32
    %0 = arith.cmpi eq, %arg1, %c0_i32 : i32
    %1 = arith.extui %0 : i1 to i32
    %c0_i32_0 = arith.constant 0 : i32
    %2 = arith.cmpi ne, %1, %c0_i32_0 : i32
    scf.if %2 {
      %c0_71 = arith.constant 0 : index
      %c0_72 = arith.constant 0 : index
      %118 = vector.load %arg3[%c0_71, %c0_72] : memref<8x128xbf16, #tpu.memory_space<vmem>>, vector<8x128xbf16>
      %c0_73 = arith.constant 0 : index
      %c0_74 = arith.constant 0 : index
      %119 = vector.load %arg4[%c0_73, %c0_74] : memref<128x128xbf16, #tpu.memory_space<vmem>>, vector<128x128xbf16>
      %cst_75 = arith.constant dense<0.000000e+00> : vector<8x128xf32>
      %120 = tpu.matmul %118, %119, %cst_75 {dimension_numbers = #tpu.dot_dimension_numbers<[1], [0], [0], [1], [0, 0, 1, 1], [], []>} : vector<8x128xbf16>, vector<128x128xbf16>, vector<8x128xf32> -> vector<8x128xf32>
      %c0_76 = arith.constant 0 : index
      %c0_77 = arith.constant 0 : index
      %121 = vector.load %arg5[%c0_76, %c0_77] : memref<1x128xf32, #tpu.memory_space<vmem>>, vector<1x128xf32>
      %122 = vector.broadcast %121 : vector<1x128xf32> to vector<8x128xf32>
      %123 = arith.addf %120, %122 : vector<8x128xf32>
      %c0_78 = arith.constant 0 : index
      %c0_79 = arith.constant 0 : index
      %124 = vector.load %arg11[%c0_78, %c0_79] : memref<8x128xf32, #tpu.memory_space<vmem>>, vector<8x128xf32>
      tpu.vector_store %arg11[%c0_78, %c0_79], %123 {strides = array<i32>} : memref<8x128xf32, #tpu.memory_space<vmem>>, vector<8x128xf32>,
    } else {
    }
    %c0 = arith.constant 0 : index
    %c0_1 = arith.constant 0 : index
    %c0_2 = arith.constant 0 : index
    %3 = vector.load %arg2[%c0, %c0_1, %c0_2] : memref<8x8x128xbf16, #tpu.memory_space<vmem>>, vector<8x8x128xbf16>
    %4 = vector.shape_cast %3 : vector<8x8x128xbf16> to vector<64x128xbf16>
    %c0_3 = arith.constant 0 : index
    %c0_4 = arith.constant 0 : index
    %5 = vector.load %arg6[%c0_3, %c0_4] : memref<128x128xbf16, #tpu.memory_space<vmem>>, vector<128x128xbf16>
    %cst = arith.constant dense<0.000000e+00> : vector<64x128xf32>
    %6 = tpu.matmul %4, %5, %cst {dimension_numbers = #tpu.dot_dimension_numbers<[1], [0], [0], [1], [0, 0, 1, 1], [], []>} : vector<64x128xbf16>, vector<128x128xbf16>, vector<64x128xf32> -> vector<64x128xf32>
    %c0_5 = arith.constant 0 : index
    %c0_6 = arith.constant 0 : index
    %7 = vector.load %arg8[%c0_5, %c0_6] : memref<1x128xf32, #tpu.memory_space<vmem>>, vector<1x128xf32>
    %8 = vector.broadcast %7 : vector<1x128xf32> to vector<64x128xf32>
    %9 = arith.addf %6, %8 : vector<64x128xf32>
    %10 = vector.shape_cast %9 : vector<64x128xf32> to vector<8x8x128xf32>
    %c0_7 = arith.constant 0 : index
    %c0_8 = arith.constant 0 : index
    %c0_9 = arith.constant 0 : index
    %11 = vector.load %arg10[%c0_7, %c0_8, %c0_9] : memref<8x8x128xf32, #tpu.memory_space<vmem>>, vector<8x8x128xf32>
    tpu.vector_store %arg10[%c0_7, %c0_8, %c0_9], %10 {strides = array<i32>} : memref<8x8x128xf32, #tpu.memory_space<vmem>>, vector<8x8x128xf32>,
    %c0_10 = arith.constant 0 : index
    %c0_11 = arith.constant 0 : index
    %12 = vector.load %arg11[%c0_10, %c0_11] : memref<8x128xf32, #tpu.memory_space<vmem>>, vector<8x128xf32>
    %c0_i32_12 = arith.constant 0 : i32
    %13 = arith.index_cast %c0_i32_12 : i32 to index
    %c0_13 = arith.constant 0 : index
    %c0_14 = arith.constant 0 : index
    %14 = vector.load %arg10[%13, %c0_13, %c0_14] : memref<8x8x128xf32, #tpu.memory_space<vmem>>, vector<1x8x128xf32>
    %15 = vector.shape_cast %14 : vector<1x8x128xf32> to vector<8x128xf32>
    %16 = arith.truncf %12 : vector<8x128xf32> to vector<8x128xbf16>
    %c0_15 = arith.constant 0 : index
    %c0_16 = arith.constant 0 : index
    %17 = vector.load %arg7[%c0_15, %c0_16] : memref<128x128xbf16, #tpu.memory_space<vmem>>, vector<128x128xbf16>
    %cst_17 = arith.constant dense<0.000000e+00> : vector<8x128xf32>
    %18 = tpu.matmul %16, %17, %cst_17 {dimension_numbers = #tpu.dot_dimension_numbers<[1], [0], [0], [1], [0, 0, 1, 1], [], []>} : vector<8x128xbf16>, vector<128x128xbf16>, vector<8x128xf32> -> vector<8x128xf32>
    %19 = arith.addf %15, %18 : vector<8x128xf32>
    %20 = math.tanh %19 : vector<8x128xf32>
    %21 = arith.truncf %20 : vector<8x128xf32> to vector<8x128xbf16>
    %22 = arith.index_cast %c0_i32_12 : i32 to index
    %c0_18 = arith.constant 0 : index
    %c0_19 = arith.constant 0 : index
    %23 = vector.load %arg9[%22, %c0_18, %c0_19] : memref<8x8x128xbf16, #tpu.memory_space<vmem>>, vector<1x8x128xbf16>
    %24 = vector.shape_cast %23 : vector<1x8x128xbf16> to vector<8x128xbf16>
    %25 = vector.shape_cast %21 : vector<8x128xbf16> to vector<1x8x128xbf16>
    tpu.vector_store %arg9[%22, %c0_18, %c0_19], %25 {strides = array<i32>} : memref<8x8x128xbf16, #tpu.memory_space<vmem>>, vector<1x8x128xbf16>,
    %c1_i32 = arith.constant 1 : i32
    %26 = arith.index_cast %c1_i32 : i32 to index
    %c0_20 = arith.constant 0 : index
    %c0_21 = arith.constant 0 : index
    %27 = vector.load %arg10[%26, %c0_20, %c0_21] : memref<8x8x128xf32, #tpu.memory_space<vmem>>, vector<1x8x128xf32>
    %28 = vector.shape_cast %27 : vector<1x8x128xf32> to vector<8x128xf32>
    %29 = arith.truncf %20 : vector<8x128xf32> to vector<8x128xbf16>
    %c0_22 = arith.constant 0 : index
    %c0_23 = arith.constant 0 : index
    %30 = vector.load %arg7[%c0_22, %c0_23] : memref<128x128xbf16, #tpu.memory_space<vmem>>, vector<128x128xbf16>
    %cst_24 = arith.constant dense<0.000000e+00> : vector<8x128xf32>
    %31 = tpu.matmul %29, %30, %cst_24 {dimension_numbers = #tpu.dot_dimension_numbers<[1], [0], [0], [1], [0, 0, 1, 1], [], []>} : vector<8x128xbf16>, vector<128x128xbf16>, vector<8x128xf32> -> vector<8x128xf32>
    %32 = arith.addf %28, %31 : vector<8x128xf32>
    %33 = math.tanh %32 : vector<8x128xf32>
    %34 = arith.truncf %33 : vector<8x128xf32> to vector<8x128xbf16>
    %35 = arith.index_cast %c1_i32 : i32 to index
    %c0_25 = arith.constant 0 : index
    %c0_26 = arith.constant 0 : index
    %36 = vector.load %arg9[%35, %c0_25, %c0_26] : memref<8x8x128xbf16, #tpu.memory_space<vmem>>, vector<1x8x128xbf16>
    %37 = vector.shape_cast %36 : vector<1x8x128xbf16> to vector<8x128xbf16>
    %38 = vector.shape_cast %34 : vector<8x128xbf16> to vector<1x8x128xbf16>
    tpu.vector_store %arg9[%35, %c0_25, %c0_26], %38 {strides = array<i32>} : memref<8x8x128xbf16, #tpu.memory_space<vmem>>, vector<1x8x128xbf16>,
    %c2_i32 = arith.constant 2 : i32
    %39 = arith.index_cast %c2_i32 : i32 to index
    %c0_27 = arith.constant 0 : index
    %c0_28 = arith.constant 0 : index
    %40 = vector.load %arg10[%39, %c0_27, %c0_28] : memref<8x8x128xf32, #tpu.memory_space<vmem>>, vector<1x8x128xf32>
    %41 = vector.shape_cast %40 : vector<1x8x128xf32> to vector<8x128xf32>
    %42 = arith.truncf %33 : vector<8x128xf32> to vector<8x128xbf16>
    %c0_29 = arith.constant 0 : index
    %c0_30 = arith.constant 0 : index
    %43 = vector.load %arg7[%c0_29, %c0_30] : memref<128x128xbf16, #tpu.memory_space<vmem>>, vector<128x128xbf16>
    %cst_31 = arith.constant dense<0.000000e+00> : vector<8x128xf32>
    %44 = tpu.matmul %42, %43, %cst_31 {dimension_numbers = #tpu.dot_dimension_numbers<[1], [0], [0], [1], [0, 0, 1, 1], [], []>} : vector<8x128xbf16>, vector<128x128xbf16>, vector<8x128xf32> -> vector<8x128xf32>
    %45 = arith.addf %41, %44 : vector<8x128xf32>
    %46 = math.tanh %45 : vector<8x128xf32>
    %47 = arith.truncf %46 : vector<8x128xf32> to vector<8x128xbf16>
    %48 = arith.index_cast %c2_i32 : i32 to index
    %c0_32 = arith.constant 0 : index
    %c0_33 = arith.constant 0 : index
    %49 = vector.load %arg9[%48, %c0_32, %c0_33] : memref<8x8x128xbf16, #tpu.memory_space<vmem>>, vector<1x8x128xbf16>
    %50 = vector.shape_cast %49 : vector<1x8x128xbf16> to vector<8x128xbf16>
    %51 = vector.shape_cast %47 : vector<8x128xbf16> to vector<1x8x128xbf16>
    tpu.vector_store %arg9[%48, %c0_32, %c0_33], %51 {strides = array<i32>} : memref<8x8x128xbf16, #tpu.memory_space<vmem>>, vector<1x8x128xbf16>,
    %c3_i32 = arith.constant 3 : i32
    %52 = arith.index_cast %c3_i32 : i32 to index
    %c0_34 = arith.constant 0 : index
    %c0_35 = arith.constant 0 : index
    %53 = vector.load %arg10[%52, %c0_34, %c0_35] : memref<8x8x128xf32, #tpu.memory_space<vmem>>, vector<1x8x128xf32>
    %54 = vector.shape_cast %53 : vector<1x8x128xf32> to vector<8x128xf32>
    %55 = arith.truncf %46 : vector<8x128xf32> to vector<8x128xbf16>
    %c0_36 = arith.constant 0 : index
    %c0_37 = arith.constant 0 : index
    %56 = vector.load %arg7[%c0_36, %c0_37] : memref<128x128xbf16, #tpu.memory_space<vmem>>, vector<128x128xbf16>
    %cst_38 = arith.constant dense<0.000000e+00> : vector<8x128xf32>
    %57 = tpu.matmul %55, %56, %cst_38 {dimension_numbers = #tpu.dot_dimension_numbers<[1], [0], [0], [1], [0, 0, 1, 1], [], []>} : vector<8x128xbf16>, vector<128x128xbf16>, vector<8x128xf32> -> vector<8x128xf32>
    %58 = arith.addf %54, %57 : vector<8x128xf32>
    %59 = math.tanh %58 : vector<8x128xf32>
    %60 = arith.truncf %59 : vector<8x128xf32> to vector<8x128xbf16>
    %61 = arith.index_cast %c3_i32 : i32 to index
    %c0_39 = arith.constant 0 : index
    %c0_40 = arith.constant 0 : index
    %62 = vector.load %arg9[%61, %c0_39, %c0_40] : memref<8x8x128xbf16, #tpu.memory_space<vmem>>, vector<1x8x128xbf16>
    %63 = vector.shape_cast %62 : vector<1x8x128xbf16> to vector<8x128xbf16>
    %64 = vector.shape_cast %60 : vector<8x128xbf16> to vector<1x8x128xbf16>
    tpu.vector_store %arg9[%61, %c0_39, %c0_40], %64 {strides = array<i32>} : memref<8x8x128xbf16, #tpu.memory_space<vmem>>, vector<1x8x128xbf16>,
    %c4_i32 = arith.constant 4 : i32
    %65 = arith.index_cast %c4_i32 : i32 to index
    %c0_41 = arith.constant 0 : index
    %c0_42 = arith.constant 0 : index
    %66 = vector.load %arg10[%65, %c0_41, %c0_42] : memref<8x8x128xf32, #tpu.memory_space<vmem>>, vector<1x8x128xf32>
    %67 = vector.shape_cast %66 : vector<1x8x128xf32> to vector<8x128xf32>
    %68 = arith.truncf %59 : vector<8x128xf32> to vector<8x128xbf16>
    %c0_43 = arith.constant 0 : index
    %c0_44 = arith.constant 0 : index
    %69 = vector.load %arg7[%c0_43, %c0_44] : memref<128x128xbf16, #tpu.memory_space<vmem>>, vector<128x128xbf16>
    %cst_45 = arith.constant dense<0.000000e+00> : vector<8x128xf32>
    %70 = tpu.matmul %68, %69, %cst_45 {dimension_numbers = #tpu.dot_dimension_numbers<[1], [0], [0], [1], [0, 0, 1, 1], [], []>} : vector<8x128xbf16>, vector<128x128xbf16>, vector<8x128xf32> -> vector<8x128xf32>
    %71 = arith.addf %67, %70 : vector<8x128xf32>
    %72 = math.tanh %71 : vector<8x128xf32>
    %73 = arith.truncf %72 : vector<8x128xf32> to vector<8x128xbf16>
    %74 = arith.index_cast %c4_i32 : i32 to index
    %c0_46 = arith.constant 0 : index
    %c0_47 = arith.constant 0 : index
    %75 = vector.load %arg9[%74, %c0_46, %c0_47] : memref<8x8x128xbf16, #tpu.memory_space<vmem>>, vector<1x8x128xbf16>
    %76 = vector.shape_cast %75 : vector<1x8x128xbf16> to vector<8x128xbf16>
    %77 = vector.shape_cast %73 : vector<8x128xbf16> to vector<1x8x128xbf16>
    tpu.vector_store %arg9[%74, %c0_46, %c0_47], %77 {strides = array<i32>} : memref<8x8x128xbf16, #tpu.memory_space<vmem>>, vector<1x8x128xbf16>,
    %c5_i32 = arith.constant 5 : i32
    %78 = arith.index_cast %c5_i32 : i32 to index
    %c0_48 = arith.constant 0 : index
    %c0_49 = arith.constant 0 : index
    %79 = vector.load %arg10[%78, %c0_48, %c0_49] : memref<8x8x128xf32, #tpu.memory_space<vmem>>, vector<1x8x128xf32>
    %80 = vector.shape_cast %79 : vector<1x8x128xf32> to vector<8x128xf32>
    %81 = arith.truncf %72 : vector<8x128xf32> to vector<8x128xbf16>
    %c0_50 = arith.constant 0 : index
    %c0_51 = arith.constant 0 : index
    %82 = vector.load %arg7[%c0_50, %c0_51] : memref<128x128xbf16, #tpu.memory_space<vmem>>, vector<128x128xbf16>
    %cst_52 = arith.constant dense<0.000000e+00> : vector<8x128xf32>
    %83 = tpu.matmul %81, %82, %cst_52 {dimension_numbers = #tpu.dot_dimension_numbers<[1], [0], [0], [1], [0, 0, 1, 1], [], []>} : vector<8x128xbf16>, vector<128x128xbf16>, vector<8x128xf32> -> vector<8x128xf32>
    %84 = arith.addf %80, %83 : vector<8x128xf32>
    %85 = math.tanh %84 : vector<8x128xf32>
    %86 = arith.truncf %85 : vector<8x128xf32> to vector<8x128xbf16>
    %87 = arith.index_cast %c5_i32 : i32 to index
    %c0_53 = arith.constant 0 : index
    %c0_54 = arith.constant 0 : index
    %88 = vector.load %arg9[%87, %c0_53, %c0_54] : memref<8x8x128xbf16, #tpu.memory_space<vmem>>, vector<1x8x128xbf16>
    %89 = vector.shape_cast %88 : vector<1x8x128xbf16> to vector<8x128xbf16>
    %90 = vector.shape_cast %86 : vector<8x128xbf16> to vector<1x8x128xbf16>
    tpu.vector_store %arg9[%87, %c0_53, %c0_54], %90 {strides = array<i32>} : memref<8x8x128xbf16, #tpu.memory_space<vmem>>, vector<1x8x128xbf16>,
    %c6_i32 = arith.constant 6 : i32
    %91 = arith.index_cast %c6_i32 : i32 to index
    %c0_55 = arith.constant 0 : index
    %c0_56 = arith.constant 0 : index
    %92 = vector.load %arg10[%91, %c0_55, %c0_56] : memref<8x8x128xf32, #tpu.memory_space<vmem>>, vector<1x8x128xf32>
    %93 = vector.shape_cast %92 : vector<1x8x128xf32> to vector<8x128xf32>
    %94 = arith.truncf %85 : vector<8x128xf32> to vector<8x128xbf16>
    %c0_57 = arith.constant 0 : index
    %c0_58 = arith.constant 0 : index
    %95 = vector.load %arg7[%c0_57, %c0_58] : memref<128x128xbf16, #tpu.memory_space<vmem>>, vector<128x128xbf16>
    %cst_59 = arith.constant dense<0.000000e+00> : vector<8x128xf32>
    %96 = tpu.matmul %94, %95, %cst_59 {dimension_numbers = #tpu.dot_dimension_numbers<[1], [0], [0], [1], [0, 0, 1, 1], [], []>} : vector<8x128xbf16>, vector<128x128xbf16>, vector<8x128xf32> -> vector<8x128xf32>
    %97 = arith.addf %93, %96 : vector<8x128xf32>
    %98 = math.tanh %97 : vector<8x128xf32>
    %99 = arith.truncf %98 : vector<8x128xf32> to vector<8x128xbf16>
    %100 = arith.index_cast %c6_i32 : i32 to index
    %c0_60 = arith.constant 0 : index
    %c0_61 = arith.constant 0 : index
    %101 = vector.load %arg9[%100, %c0_60, %c0_61] : memref<8x8x128xbf16, #tpu.memory_space<vmem>>, vector<1x8x128xbf16>
    %102 = vector.shape_cast %101 : vector<1x8x128xbf16> to vector<8x128xbf16>
    %103 = vector.shape_cast %99 : vector<8x128xbf16> to vector<1x8x128xbf16>
    tpu.vector_store %arg9[%100, %c0_60, %c0_61], %103 {strides = array<i32>} : memref<8x8x128xbf16, #tpu.memory_space<vmem>>, vector<1x8x128xbf16>,
    %c7_i32 = arith.constant 7 : i32
    %104 = arith.index_cast %c7_i32 : i32 to index
    %c0_62 = arith.constant 0 : index
    %c0_63 = arith.constant 0 : index
    %105 = vector.load %arg10[%104, %c0_62, %c0_63] : memref<8x8x128xf32, #tpu.memory_space<vmem>>, vector<1x8x128xf32>
    %106 = vector.shape_cast %105 : vector<1x8x128xf32> to vector<8x128xf32>
    %107 = arith.truncf %98 : vector<8x128xf32> to vector<8x128xbf16>
    %c0_64 = arith.constant 0 : index
    %c0_65 = arith.constant 0 : index
    %108 = vector.load %arg7[%c0_64, %c0_65] : memref<128x128xbf16, #tpu.memory_space<vmem>>, vector<128x128xbf16>
    %cst_66 = arith.constant dense<0.000000e+00> : vector<8x128xf32>
    %109 = tpu.matmul %107, %108, %cst_66 {dimension_numbers = #tpu.dot_dimension_numbers<[1], [0], [0], [1], [0, 0, 1, 1], [], []>} : vector<8x128xbf16>, vector<128x128xbf16>, vector<8x128xf32> -> vector<8x128xf32>
    %110 = arith.addf %106, %109 : vector<8x128xf32>
    %111 = math.tanh %110 : vector<8x128xf32>
    %112 = arith.truncf %111 : vector<8x128xf32> to vector<8x128xbf16>
    %113 = arith.index_cast %c7_i32 : i32 to index
    %c0_67 = arith.constant 0 : index
    %c0_68 = arith.constant 0 : index
    %114 = vector.load %arg9[%113, %c0_67, %c0_68] : memref<8x8x128xbf16, #tpu.memory_space<vmem>>, vector<1x8x128xbf16>
    %115 = vector.shape_cast %114 : vector<1x8x128xbf16> to vector<8x128xbf16>
    %116 = vector.shape_cast %112 : vector<8x128xbf16> to vector<1x8x128xbf16>
    tpu.vector_store %arg9[%113, %c0_67, %c0_68], %116 {strides = array<i32>} : memref<8x8x128xbf16, #tpu.memory_space<vmem>>, vector<1x8x128xbf16>,
    %c8_i32 = arith.constant 8 : i32
    %c0_69 = arith.constant 0 : index
    %c0_70 = arith.constant 0 : index
    %117 = vector.load %arg11[%c0_69, %c0_70] : memref<8x128xf32, #tpu.memory_space<vmem>>, vector<8x128xf32>
    tpu.vector_store %arg11[%c0_69, %c0_70], %111 {strides = array<i32>} : memref<8x128xf32, #tpu.memory_space<vmem>>, vector<8x128xf32>,
    return
  }
  func.func @transform_0(%arg0: i32, %arg1: i32) -> (i32, i32, i32) {
    %c0_i32 = arith.constant 0 : i32
    %c0_i32_0 = arith.constant 0 : i32
    return %arg1, %arg0, %c0_i32 : i32, i32, i32
  }
  func.func @transform_1(%arg0: i32, %arg1: i32) -> (i32, i32) {
    %c0_i32 = arith.constant 0 : i32
    %c0_i32_0 = arith.constant 0 : i32
    return %arg0, %c0_i32 : i32, i32
  }
  func.func @transform_2(%arg0: i32, %arg1: i32) -> (i32, i32) {
    %c0_i32 = arith.constant 0 : i32
    %c0_i32_0 = arith.constant 0 : i32
    %c0_i32_1 = arith.constant 0 : i32
    return %c0_i32, %c0_i32_0 : i32, i32
  }
  func.func @transform_3(%arg0: i32, %arg1: i32) -> (i32, i32) {
    %c0_i32 = arith.constant 0 : i32
    %c0_i32_0 = arith.constant 0 : i32
    %c0_i32_1 = arith.constant 0 : i32
    return %c0_i32, %c0_i32_0 : i32, i32
  }
  func.func @transform_4(%arg0: i32, %arg1: i32) -> (i32, i32) {
    %c0_i32 = arith.constant 0 : i32
    %c0_i32_0 = arith.constant 0 : i32
    %c0_i32_1 = arith.constant 0 : i32
    return %c0_i32, %c0_i32_0 : i32, i32
  }
  func.func @transform_5(%arg0: i32, %arg1: i32) -> (i32, i32) {
    %c0_i32 = arith.constant 0 : i32
    %c0_i32_0 = arith.constant 0 : i32
    %c0_i32_1 = arith.constant 0 : i32
    return %c0_i32, %c0_i32_0 : i32, i32
  }
  func.func @transform_6(%arg0: i32, %arg1: i32) -> (i32, i32) {
    %c0_i32 = arith.constant 0 : i32
    %c0_i32_0 = arith.constant 0 : i32
    %c0_i32_1 = arith.constant 0 : i32
    return %c0_i32, %c0_i32_0 : i32, i32
  }
  func.func @transform_7(%arg0: i32, %arg1: i32) -> (i32, i32, i32) {
    %c0_i32 = arith.constant 0 : i32
    %c0_i32_0 = arith.constant 0 : i32
    return %arg1, %arg0, %c0_i32 : i32, i32, i32
  }
}

</mosaic_0001>

<llo_original>
// kernel: tpu_custom_call.1
$region0: #{tpu_custom_call.1}
  #allocation0 [shape = 'u32[]', space=smem, size = 0x4, offset = 0x4, fixed_abs, tag = 'smem constant byte address 0x4 - core index']
  #allocation1 [shape = 'u32[72,128]{1,0:T(1,128)}', space=vmem, size = 0x9000, scoped, tag = 'internal scratch']
  #allocation2 [shape = 'f32[8,8,128]{2,1,0:T(8,128)}', space=vmem, size = 0x8000, scoped, tag = 'scratch operand']
  #allocation3 [shape = 'f32[8,128]{1,0:T(8,128)}', space=vmem, size = 0x1000, scoped, tag = 'scratch operand']
  %s0 = inlined_call_operand.hbm [shape: bf16[8,8,128], index: 0, kind: input, shape index: {}]
  %s1 = inlined_call_operand.hbm [shape: bf16[8,128], index: 1, kind: input, shape index: {}]
  %s2 = inlined_call_operand.hbm [shape: bf16[128,128], index: 2, kind: input, shape index: {}]
  %s3 = inlined_call_operand.vmem [shape: f32[1,128], index: 3, kind: input, shape index: {}]
  %s4 = inlined_call_operand.hbm [shape: bf16[128,128], index: 4, kind: input, shape index: {}]
  %s5 = inlined_call_operand.hbm [shape: bf16[128,128], index: 5, kind: input, shape index: {}]
  %s6 = inlined_call_operand.vmem [shape: f32[1,128], index: 6, kind: input, shape index: {}]
  %s7 = inlined_call_operand.hbm [shape: bf16[8,8,128], index: 7, kind: output, shape index: {}]
  %s8 = sld [smem:[#allocation0]]
  $region62: #{tpu_custom_call.1} parent=0
    _
  %s10 = ssub.s32 1, %s8
  %s11 = scalar_select 0, %s10, %s8
  $region1: #{tpu_custom_call.1} parent=0
    #allocation4 [shape = 'u8[16384]{0}', space=vmem, size = 0x4000, scoped, tag = 'input window, operand 0, single buffered']
    #allocation5 [shape = 's32[1]{0}', space=sflag, size = 0x4, scoped, tag = 'scoped memory for tpu_custom_call.1']
    #allocation6 [shape = 's32[1]{0}', space=sflag, size = 0x4, scoped, tag = 'scoped memory for tpu_custom_call.1']
    #allocation7 [shape = 'u8[2048]{0}', space=vmem, size = 0x800, scoped, tag = 'input window, operand 1, single buffered']
    #allocation8 [shape = 's32[1]{0}', space=sflag, size = 0x4, scoped, tag = 'scoped memory for tpu_custom_call.1']
    #allocation9 [shape = 'u8[32768]{0}', space=vmem, size = 0x8000, scoped, tag = 'input window, operand 2, single buffered']
    #allocation10 [shape = 'u8[32768]{0}', space=vmem, size = 0x8000, scoped, tag = 'input window, operand 4, single buffered']
    #allocation11 [shape = 's32[1]{0}', space=sflag, size = 0x4, scoped, tag = 'scoped memory for tpu_custom_call.1']
    #allocation12 [shape = 'u8[32768]{0}', space=vmem, size = 0x8000, scoped, tag = 'input window, operand 5, single buffered']
    #allocation13 [shape = 'u8[16384]{0}', space=vmem, size = 0x4000, scoped, tag = 'output window, operand 0, single buffered']
    %12 = vsyncpa [#allocation5], 0
    %13 = vsyncpa [#allocation8], 0
    %14 = vsyncpa [#allocation11], 0
    %15 = vsyncpa [#allocation6], 0
    // Predicated region
    $region2: #{tpu_custom_call.1} parent=1 // pred_check
      _
    $region3: #{tpu_custom_call.1} parent=1 // pred_check_branch
      %17 = sbr.rel (0) target = $region5
    $region4: #{tpu_custom_call.1} parent=1 // pred_region
      %19 = vsyncadd [#allocation5], 0
      %s20 = sshll.u32 %s0, 4
      %s21 = int_to_ptr.hbm [resolvable:$true] %s20
      %s22 = sshll.u32 [#allocation4], 4
      %s23 = int_to_ptr.vmem [resolvable:$true] %s22
      %28 = dma.hbm_to_vmem [thread:$0]  %s21, 512, %s23, [#allocation5], 64, 64, 4
    $region5: #{tpu_custom_call.1} parent=1 // pred_fallthru
      _
    // Predicated region
    $region6: #{tpu_custom_call.1} parent=1 // pred_check
      _
    $region7: #{tpu_custom_call.1} parent=1 // pred_check_branch
      %30 = sbr.rel (0) target = $region9
    $region8: #{tpu_custom_call.1} parent=1 // pred_region
      %32 = vsyncadd [#allocation8], 0
      %s34 = sshll.u32 %s1, 4
      %s35 = int_to_ptr.hbm [resolvable:$true] %s34
      %s36 = sshll.u32 [#allocation7], 4
      %s37 = int_to_ptr.vmem [resolvable:$true] %s36
      %39 = dma.hbm_to_vmem [thread:$0]  %s35, 64, %s37, [#allocation8]
    $region9: #{tpu_custom_call.1} parent=1 // pred_fallthru
      _
    // Predicated region
    $region10: #{tpu_custom_call.1} parent=1 // pred_check
      _
    $region11: #{tpu_custom_call.1} parent=1 // pred_check_branch
      %41 = sbr.rel (0) target = $region13
    $region12: #{tpu_custom_call.1} parent=1 // pred_region
      %43 = vsyncadd [#allocation8], 0
      %s44 = sshll.u32 %s2, 4
      %s45 = int_to_ptr.hbm [resolvable:$true] %s44
      %s46 = sshll.u32 [#allocation9], 4
      %s47 = int_to_ptr.vmem [resolvable:$true] %s46
      %52 = dma.hbm_to_vmem [thread:$0]  %s45, 1024, %s47, [#allocation8], 64, 64, 4
    $region13: #{tpu_custom_call.1} parent=1 // pred_fallthru
      _
    // Predicated region
    $region14: #{tpu_custom_call.1} parent=1 // pred_check
      _
    $region15: #{tpu_custom_call.1} parent=1 // pred_check_branch
      %54 = sbr.rel (0) target = $region17
    $region16: #{tpu_custom_call.1} parent=1 // pred_region
      _
    $region17: #{tpu_custom_call.1} parent=1 // pred_fallthru
      _
    // Predicated region
    $region18: #{tpu_custom_call.1} parent=1 // pred_check
      _
    $region19: #{tpu_custom_call.1} parent=1 // pred_check_branch
      %56 = sbr.rel (0) target = $region21
    $region20: #{tpu_custom_call.1} parent=1 // pred_region
      %58 = vsyncadd [#allocation11], 0
      %s59 = sshll.u32 %s4, 4
      %s60 = int_to_ptr.hbm [resolvable:$true] %s59
      %s61 = sshll.u32 [#allocation10], 4
      %s62 = int_to_ptr.vmem [resolvable:$true] %s61
      %67 = dma.hbm_to_vmem [thread:$0]  %s60, 1024, %s62, [#allocation11], 64, 64, 4
    $region21: #{tpu_custom_call.1} parent=1 // pred_fallthru
      _
    // Predicated region
    $region22: #{tpu_custom_call.1} parent=1 // pred_check
      _
    $region23: #{tpu_custom_call.1} parent=1 // pred_check_branch
      %69 = sbr.rel (0) target = $region25
    $region24: #{tpu_custom_call.1} parent=1 // pred_region
      %71 = vsyncadd [#allocation11], 0
      %s72 = sshll.u32 %s5, 4
      %s73 = int_to_ptr.hbm [resolvable:$true] %s72
      %s74 = sshll.u32 [#allocation12], 4
      %s75 = int_to_ptr.vmem [resolvable:$true] %s74
      %80 = dma.hbm_to_vmem [thread:$0]  %s73, 1024, %s75, [#allocation11], 64, 64, 4
    $region25: #{tpu_custom_call.1} parent=1 // pred_fallthru
      _
    // Predicated region
    $region26: #{tpu_custom_call.1} parent=1 // pred_check
      _
    $region27: #{tpu_custom_call.1} parent=1 // pred_check_branch
      %82 = sbr.rel (0) target = $region29
    $region28: #{tpu_custom_call.1} parent=1 // pred_region
      _
    $region29: #{tpu_custom_call.1} parent=1 // pred_fallthru
      _
    // Predicated region
    $region30: #{tpu_custom_call.1} parent=1 // pred_check
      _
    $region31: #{tpu_custom_call.1} parent=1 // pred_check_branch
      %84 = sbr.rel (0) target = $region33
    $region32: #{tpu_custom_call.1} parent=1 // pred_region
      %86 = dma.done [#allocation5], 512
    $region33: #{tpu_custom_call.1} parent=1 // pred_fallthru
      _
    // Predicated region
    $region34: #{tpu_custom_call.1} parent=1 // pred_check
      _
    $region35: #{tpu_custom_call.1} parent=1 // pred_check_branch
      %88 = sbr.rel (0) target = $region37
    $region36: #{tpu_custom_call.1} parent=1 // pred_region
      %90 = dma.done [#allocation8], 64
    $region37: #{tpu_custom_call.1} parent=1 // pred_fallthru
      _
    // Predicated region
    $region38: #{tpu_custom_call.1} parent=1 // pred_check
      _
    $region39: #{tpu_custom_call.1} parent=1 // pred_check_branch
      %92 = sbr.rel (0) target = $region41
    $region40: #{tpu_custom_call.1} parent=1 // pred_region
      %94 = dma.done [#allocation8], 1024
    $region41: #{tpu_custom_call.1} parent=1 // pred_fallthru
      _
    // Predicated region
    $region42: #{tpu_custom_call.1} parent=1 // pred_check
      _
    $region43: #{tpu_custom_call.1} parent=1 // pred_check_branch
      %96 = sbr.rel (0) target = $region45
    $region44: #{tpu_custom_call.1} parent=1 // pred_region
      %98 = dma.done [#allocation11], 1024
    $region45: #{tpu_custom_call.1} parent=1 // pred_fallthru
      _
    // Predicated region
    $region46: #{tpu_custom_call.1} parent=1 // pred_check
      _
    $region47: #{tpu_custom_call.1} parent=1 // pred_check_branch
      %100 = sbr.rel (0) target = $region49
    $region48: #{tpu_custom_call.1} parent=1 // pred_region
      %102 = dma.done [#allocation11], 1024
    $region49: #{tpu_custom_call.1} parent=1 // pred_fallthru
      _
    %p103 = scmp.eq.s32.totalorder 0, 0
    // Predicated region
    $region50: #{tpu_custom_call.1} parent=1 // pred_check
      %p104 = pneg %p103
    $region51: #{tpu_custom_call.1} parent=1 // pred_check_branch
      %106 = sbr.rel (%p104) target = $region53
    $region52: #{tpu_custom_call.1} parent=1 // pred_region
      %v107 = vld [vmem:[#allocation7] sm:$0xf]
      %v108 = vld [vmem:[#allocation9] sm:$0xf]
      %v109 = vld [vmem:[#allocation9 + $0x4] sm:$0xf]
      %v110 = vld [vmem:[#allocation9 + $0x8] sm:$0xf]
      %v111 = vld [vmem:[#allocation9 + $0xc] sm:$0xf]
      %v112 = vld [vmem:[#allocation9 + $0x10] sm:$0xf]
      %v113 = vld [vmem:[#allocation9 + $0x14] sm:$0xf]
      %v114 = vld [vmem:[#allocation9 + $0x18] sm:$0xf]
      %v115 = vld [vmem:[#allocation9 + $0x1c] sm:$0xf]
      %v116 = vld [vmem:[#allocation9 + $0x20] sm:$0xf]
      %v117 = vld [vmem:[#allocation9 + $0x24] sm:$0xf]
      %v118 = vld [vmem:[#allocation9 + $0x28] sm:$0xf]
      %v119 = vld [vmem:[#allocation9 + $0x2c] sm:$0xf]
      %v120 = vld [vmem:[#allocation9 + $0x30] sm:$0xf]
      %v121 = vld [vmem:[#allocation9 + $0x34] sm:$0xf]
      %v122 = vld [vmem:[#allocation9 + $0x38] sm:$0xf]
      %v123 = vld [vmem:[#allocation9 + $0x3c] sm:$0xf]
      %v124 = vld [vmem:[%s3] sm:$0x1]
      %v126 = vperm.slane %v124, 0
      %v144 = vunpack.c.l.b16 %v108
      %v145 = vunpack.c.l.b16 %v109
      %v146 = vunpack.c.l.b16 %v110
      %v147 = vunpack.c.l.b16 %v111
      %v148 = vunpack.c.l.b16 %v112
      %v149 = vunpack.c.l.b16 %v113
      %v150 = vunpack.c.l.b16 %v114
      %v151 = vunpack.c.l.b16 %v115
      %v152 = vunpack.c.l.b16 %v116
      %v153 = vunpack.c.l.b16 %v117
      %v154 = vunpack.c.l.b16 %v118
      %v155 = vunpack.c.l.b16 %v119
      %v156 = vunpack.c.l.b16 %v120
      %v157 = vunpack.c.l.b16 %v121
      %v158 = vunpack.c.l.b16 %v122
      %v159 = vunpack.c.l.b16 %v123
      %v160 = vpack.c.b16 %v145, %v144
      %v161 = vpack.c.b16 %v147, %v146
      %v162 = vpack.c.b16 %v149, %v148
      %v163 = vpack.c.b16 %v151, %v150
      %v164 = vpack.c.b16 %v153, %v152
      %v165 = vpack.c.b16 %v155, %v154
      %v166 = vpack.c.b16 %v157, %v156
      %v167 = vpack.c.b16 %v159, %v158
      %176 = vmatpush.bf16.msra.mxu0 %v167
      %177 = vmatpush.bf16.msra.mxu0 %v166
      %178 = vmatpush.bf16.msra.mxu0 %v165
      %179 = vmatpush.bf16.msra.mxu0 %v164
      %180 = vmatpush.bf16.msra.mxu0 %v163
      %181 = vmatpush.bf16.msra.mxu0 %v162
      %182 = vmatpush.bf16.msra.mxu0 %v161
      %183 = vmatpush.bf16.msra.mxu0 %v160
      %184 = vmatmul.bf16.gmra.mxu0 %v107
      %v185 = vpop.f32.mrf.mxu0
      %v186 = vadd.f32 %v126, %v185
      %v187 = vpop.f32.mrf.mxu0
      %188 = vdwg.mxu0
      %189 = vst [vmem:[#allocation3] sm:$0xff] %v186
    $region53: #{tpu_custom_call.1} parent=1 // pred_fallthru
      _
    %v190 = vld [vmem:[#allocation4] sm:$0xf]
    %v191 = vld [vmem:[#allocation4 + $0x4] sm:$0xf]
    %v192 = vld [vmem:[#allocation4 + $0x8] sm:$0xf]
    %v193 = vld [vmem:[#allocation4 + $0xc] sm:$0xf]
    %v194 = vld [vmem:[#allocation4 + $0x10] sm:$0xf]
    %v195 = vld [vmem:[#allocation4 + $0x14] sm:$0xf]
    %v196 = vld [vmem:[#allocation4 + $0x18] sm:$0xf]
    %v197 = vld [vmem:[#allocation4 + $0x1c] sm:$0xf]
    %v198 = vld [vmem:[#allocation10] sm:$0xf]
    %v199 = vld [vmem:[#allocation10 + $0x4] sm:$0xf]
    %v200 = vld [vmem:[#allocation10 + $0x8] sm:$0xf]
    %v201 = vld [vmem:[#allocation10 + $0xc] sm:$0xf]
    %v202 = vld [vmem:[#allocation10 + $0x10] sm:$0xf]
    %v203 = vld [vmem:[#allocation10 + $0x14] sm:$0xf]
    %v204 = vld [vmem:[#allocation10 + $0x18] sm:$0xf]
    %v205 = vld [vmem:[#allocation10 + $0x1c] sm:$0xf]
    %v206 = vld [vmem:[#allocation10 + $0x20] sm:$0xf]
    %v207 = vld [vmem:[#allocation10 + $0x24] sm:$0xf]
    %v208 = vld [vmem:[#allocation10 + $0x28] sm:$0xf]
    %v209 = vld [vmem:[#allocation10 + $0x2c] sm:$0xf]
    %v210 = vld [vmem:[#allocation10 + $0x30] sm:$0xf]
    %v211 = vld [vmem:[#allocation10 + $0x34] sm:$0xf]
    %v212 = vld [vmem:[#allocation10 + $0x38] sm:$0xf]
    %v213 = vld [vmem:[#allocation10 + $0x3c] sm:$0xf]
    %v214 = vld [vmem:[%s6] sm:$0x1]
    %v216 = vperm.slane %v214, 0
    %v226 = vunpack.c.l.b16 %v190
    %v227 = vunpack.c.l.b16 %v191
    %v228 = vunpack.c.l.b16 %v192
    %v229 = vunpack.c.l.b16 %v193
    %v230 = vunpack.c.l.b16 %v194
    %v231 = vunpack.c.l.b16 %v195
    %v232 = vunpack.c.l.b16 %v196
    %v233 = vunpack.c.l.b16 %v197
    %v234 = vpack.c.b16 %v227, %v226
    %v235 = vpack.c.b16 %v229, %v228
    %v236 = vpack.c.b16 %v231, %v230
    %v237 = vpack.c.b16 %v233, %v232
    %v258 = vunpack.c.l.b16 %v198
    %v259 = vunpack.c.l.b16 %v199
    %v260 = vunpack.c.l.b16 %v200
    %v261 = vunpack.c.l.b16 %v201
    %v262 = vunpack.c.l.b16 %v202
    %v263 = vunpack.c.l.b16 %v203
    %v264 = vunpack.c.l.b16 %v204
    %v265 = vunpack.c.l.b16 %v205
    %v266 = vunpack.c.l.b16 %v206
    %v267 = vunpack.c.l.b16 %v207
    %v268 = vunpack.c.l.b16 %v208
    %v269 = vunpack.c.l.b16 %v209
    %v270 = vunpack.c.l.b16 %v210
    %v271 = vunpack.c.l.b16 %v211
    %v272 = vunpack.c.l.b16 %v212
    %v273 = vunpack.c.l.b16 %v213
    %v274 = vpack.c.b16 %v259, %v258
    %v275 = vpack.c.b16 %v261, %v260
    %v276 = vpack.c.b16 %v263, %v262
    %v277 = vpack.c.b16 %v265, %v264
    %v278 = vpack.c.b16 %v267, %v266
    %v279 = vpack.c.b16 %v269, %v268
    %v280 = vpack.c.b16 %v271, %v270
    %v281 = vpack.c.b16 %v273, %v272
    %290 = vmatpush.bf16.msra.mxu0 %v281
    %291 = vmatpush.bf16.msra.mxu0 %v280
    %292 = vmatpush.bf16.msra.mxu0 %v279
    %293 = vmatpush.bf16.msra.mxu0 %v278
    %294 = vmatpush.bf16.msra.mxu0 %v277
    %295 = vmatpush.bf16.msra.mxu0 %v276
    %296 = vmatpush.bf16.msra.mxu0 %v275
    %297 = vmatpush.bf16.msra.mxu0 %v274
    %298 = vmatmul.bf16.gmra.mxu0 %v234
    %v299 = vpop.f32.mrf.mxu0
    %v300 = vadd.f32 %v216, %v299
    %v301 = vpop.f32.mrf.mxu0
    %v302 = vadd.f32 %v216, %v301
    %303 = vmatmul.bf16.gmra.mxu0 %v235
    %v304 = vpop.f32.mrf.mxu0
    %v305 = vadd.f32 %v216, %v304
    %v306 = vpop.f32.mrf.mxu0
    %v307 = vadd.f32 %v216, %v306
    %308 = vmatmul.bf16.gmra.mxu0 %v236
    %v309 = vpop.f32.mrf.mxu0
    %v310 = vadd.f32 %v216, %v309
    %v311 = vpop.f32.mrf.mxu0
    %v312 = vadd.f32 %v216, %v311
    %313 = vmatmul.bf16.gmra.mxu0 %v237
    %v314 = vpop.f32.mrf.mxu0
    %v315 = vadd.f32 %v216, %v314
    %v316 = vpop.f32.mrf.mxu0
    %v317 = vadd.f32 %v216, %v316
    %318 = vdwg.mxu0
    %319 = vst [vmem:[#allocation2] sm:$0xff] %v300
    %320 = vst [vmem:[#allocation2 + $0x8] sm:$0xff] %v302
    %321 = vst [vmem:[#allocation2 + $0x10] sm:$0xff] %v305
    %322 = vst [vmem:[#allocation2 + $0x18] sm:$0xff] %v307
    %323 = vst [vmem:[#allocation2 + $0x20] sm:$0xff] %v310
    %324 = vst [vmem:[#allocation2 + $0x28] sm:$0xff] %v312
    %325 = vst [vmem:[#allocation2 + $0x30] sm:$0xff] %v315
    %326 = vst [vmem:[#allocation2 + $0x38] sm:$0xff] %v317
    %v327 = vld [vmem:[#allocation3] sm:$0xff]
    %v328 = vld [vmem:[#allocation2] sm:$0xff]
    %v329 = vpack.c.bf16 %v327, %v327
    %v330 = vld [vmem:[#allocation12] sm:$0xf]
    %v331 = vld [vmem:[#allocation12 + $0x4] sm:$0xf]
    %v332 = vld [vmem:[#allocation12 + $0x8] sm:$0xf]
    %v333 = vld [vmem:[#allocation12 + $0xc] sm:$0xf]
    %v334 = vld [vmem:[#allocation12 + $0x10] sm:$0xf]
    %v335 = vld [vmem:[#allocation12 + $0x14] sm:$0xf]
    %v336 = vld [vmem:[#allocation12 + $0x18] sm:$0xf]
    %v337 = vld [vmem:[#allocation12 + $0x1c] sm:$0xf]
    %v338 = vld [vmem:[#allocation12 + $0x20] sm:$0xf]
    %v339 = vld [vmem:[#allocation12 + $0x24] sm:$0xf]
    %v340 = vld [vmem:[#allocation12 + $0x28] sm:$0xf]
    %v341 = vld [vmem:[#allocation12 + $0x2c] sm:$0xf]
    %v342 = vld [vmem:[#allocation12 + $0x30] sm:$0xf]
    %v343 = vld [vmem:[#allocation12 + $0x34] sm:$0xf]
    %v344 = vld [vmem:[#allocation12 + $0x38] sm:$0xf]
    %v345 = vld [vmem:[#allocation12 + $0x3c] sm:$0xf]
    %v362 = vunpack.c.l.b16 %v330
    %v363 = vunpack.c.l.b16 %v331
    %v364 = vunpack.c.l.b16 %v332
    %v365 = vunpack.c.l.b16 %v333
    %v366 = vunpack.c.l.b16 %v334
    %v367 = vunpack.c.l.b16 %v335
    %v368 = vunpack.c.l.b16 %v336
    %v369 = vunpack.c.l.b16 %v337
    %v370 = vunpack.c.l.b16 %v338
    %v371 = vunpack.c.l.b16 %v339
    %v372 = vunpack.c.l.b16 %v340
    %v373 = vunpack.c.l.b16 %v341
    %v374 = vunpack.c.l.b16 %v342
    %v375 = vunpack.c.l.b16 %v343
    %v376 = vunpack.c.l.b16 %v344
    %v377 = vunpack.c.l.b16 %v345
    %v378 = vpack.c.b16 %v363, %v362
    %v379 = vpack.c.b16 %v365, %v364
    %v380 = vpack.c.b16 %v367, %v366
    %v381 = vpack.c.b16 %v369, %v368
    %v382 = vpack.c.b16 %v371, %v370
    %v383 = vpack.c.b16 %v373, %v372
    %v384 = vpack.c.b16 %v375, %v374
    %v385 = vpack.c.b16 %v377, %v376
    %394 = vmatpush.bf16.msra.mxu0 %v385
    %395 = vmatpush.bf16.msra.mxu0 %v384
    %396 = vmatpush.bf16.msra.mxu0 %v383
    %397 = vmatpush.bf16.msra.mxu0 %v382
    %398 = vmatpush.bf16.msra.mxu0 %v381
    %399 = vmatpush.bf16.msra.mxu0 %v380
    %400 = vmatpush.bf16.msra.mxu0 %v379
    %401 = vmatpush.bf16.msra.mxu0 %v378
    %402 = vmatmul.bf16.gmra.mxu0 %v329
    %v403 = vpop.f32.mrf.mxu0
    %v404 = vadd.f32 0.0, %v403
    %v405 = vpop.f32.mrf.mxu0
    %406 = vdwg.mxu0
    %v407 = vadd.f32 %v328, %v404
    %v408 = vtanh.pop %v407
    %v409 = vpack.c.bf16 %v408, %v408
    %410 = vst [vmem:[#allocation13] sm:$0xf] %v409
    %s411 = scalar_lea.vmem [#allocation2], 8
    %v412 = vld [vmem:[%s411] sm:$0xff]
    %v413 = vld [vmem:[#allocation12] sm:$0xf]
    %v414 = vld [vmem:[#allocation12 + $0x4] sm:$0xf]
    %v415 = vld [vmem:[#allocation12 + $0x8] sm:$0xf]
    %v416 = vld [vmem:[#allocation12 + $0xc] sm:$0xf]
    %v417 = vld [vmem:[#allocation12 + $0x10] sm:$0xf]
    %v418 = vld [vmem:[#allocation12 + $0x14] sm:$0xf]
    %v419 = vld [vmem:[#allocation12 + $0x18] sm:$0xf]
    %v420 = vld [vmem:[#allocation12 + $0x1c] sm:$0xf]
    %v421 = vld [vmem:[#allocation12 + $0x20] sm:$0xf]
    %v422 = vld [vmem:[#allocation12 + $0x24] sm:$0xf]
    %v423 = vld [vmem:[#allocation12 + $0x28] sm:$0xf]
    %v424 = vld [vmem:[#allocation12 + $0x2c] sm:$0xf]
    %v425 = vld [vmem:[#allocation12 + $0x30] sm:$0xf]
    %v426 = vld [vmem:[#allocation12 + $0x34] sm:$0xf]
    %v427 = vld [vmem:[#allocation12 + $0x38] sm:$0xf]
    %v428 = vld [vmem:[#allocation12 + $0x3c] sm:$0xf]
    %v445 = vunpack.c.l.b16 %v413
    %v446 = vunpack.c.l.b16 %v414
    %v447 = vunpack.c.l.b16 %v415
    %v448 = vunpack.c.l.b16 %v416
    %v449 = vunpack.c.l.b16 %v417
    %v450 = vunpack.c.l.b16 %v418
    %v451 = vunpack.c.l.b16 %v419
    %v452 = vunpack.c.l.b16 %v420
    %v453 = vunpack.c.l.b16 %v421
    %v454 = vunpack.c.l.b16 %v422
    %v455 = vunpack.c.l.b16 %v423
    %v456 = vunpack.c.l.b16 %v424
    %v457 = vunpack.c.l.b16 %v425
    %v458 = vunpack.c.l.b16 %v426
    %v459 = vunpack.c.l.b16 %v427
    %v460 = vunpack.c.l.b16 %v428
    %v461 = vpack.c.b16 %v446, %v445
    %v462 = vpack.c.b16 %v448, %v447
    %v463 = vpack.c.b16 %v450, %v449
    %v464 = vpack.c.b16 %v452, %v451
    %v465 = vpack.c.b16 %v454, %v453
    %v466 = vpack.c.b16 %v456, %v455
    %v467 = vpack.c.b16 %v458, %v457
    %v468 = vpack.c.b16 %v460, %v459
    %477 = vmatpush.bf16.msra.mxu0 %v468
    %478 = vmatpush.bf16.msra.mxu0 %v467
    %479 = vmatpush.bf16.msra.mxu0 %v466
    %480 = vmatpush.bf16.msra.mxu0 %v465
    %481 = vmatpush.bf16.msra.mxu0 %v464
    %482 = vmatpush.bf16.msra.mxu0 %v463
    %483 = vmatpush.bf16.msra.mxu0 %v462
    %484 = vmatpush.bf16.msra.mxu0 %v461
    %485 = vmatmul.bf16.gmra.mxu0 %v409
    %v486 = vpop.f32.mrf.mxu0
    %v487 = vadd.f32 0.0, %v486
    %v488 = vpop.f32.mrf.mxu0
    %489 = vdwg.mxu0
    %v490 = vadd.f32 %v412, %v487
    %v491 = vtanh.pop %v490
    %v492 = vpack.c.bf16 %v491, %v491
    %s493 = scalar_lea.vmem [#allocation13], 4
    %494 = vst [vmem:[%s493] sm:$0xf] %v492
    %s495 = scalar_lea.vmem [#allocation2], 16
    %v496 = vld [vmem:[%s495] sm:$0xff]
    %v497 = vld [vmem:[#allocation12] sm:$0xf]
    %v498 = vld [vmem:[#allocation12 + $0x4] sm:$0xf]
    %v499 = vld [vmem:[#allocation12 + $0x8] sm:$0xf]
    %v500 = vld [vmem:[#allocation12 + $0xc] sm:$0xf]
    %v501 = vld [vmem:[#allocation12 + $0x10] sm:$0xf]
    %v502 = vld [vmem:[#allocation12 + $0x14] sm:$0xf]
    %v503 = vld [vmem:[#allocation12 + $0x18] sm:$0xf]
    %v504 = vld [vmem:[#allocation12 + $0x1c] sm:$0xf]
    %v505 = vld [vmem:[#allocation12 + $0x20] sm:$0xf]
    %v506 = vld [vmem:[#allocation12 + $0x24] sm:$0xf]
    %v507 = vld [vmem:[#allocation12 + $0x28] sm:$0xf]
    %v508 = vld [vmem:[#allocation12 + $0x2c] sm:$0xf]
    %v509 = vld [vmem:[#allocation12 + $0x30] sm:$0xf]
    %v510 = vld [vmem:[#allocation12 + $0x34] sm:$0xf]
    %v511 = vld [vmem:[#allocation12 + $0x38] sm:$0xf]
    %v512 = vld [vmem:[#allocation12 + $0x3c] sm:$0xf]
    %v529 = vunpack.c.l.b16 %v497
    %v530 = vunpack.c.l.b16 %v498
    %v531 = vunpack.c.l.b16 %v499
    %v532 = vunpack.c.l.b16 %v500
    %v533 = vunpack.c.l.b16 %v501
    %v534 = vunpack.c.l.b16 %v502
    %v535 = vunpack.c.l.b16 %v503
    %v536 = vunpack.c.l.b16 %v504
    %v537 = vunpack.c.l.b16 %v505
    %v538 = vunpack.c.l.b16 %v506
    %v539 = vunpack.c.l.b16 %v507
    %v540 = vunpack.c.l.b16 %v508
    %v541 = vunpack.c.l.b16 %v509
    %v542 = vunpack.c.l.b16 %v510
    %v543 = vunpack.c.l.b16 %v511
    %v544 = vunpack.c.l.b16 %v512
    %v545 = vpack.c.b16 %v530, %v529
    %v546 = vpack.c.b16 %v532, %v531
    %v547 = vpack.c.b16 %v534, %v533
    %v548 = vpack.c.b16 %v536, %v535
    %v549 = vpack.c.b16 %v538, %v537
    %v550 = vpack.c.b16 %v540, %v539
    %v551 = vpack.c.b16 %v542, %v541
    %v552 = vpack.c.b16 %v544, %v543
    %561 = vmatpush.bf16.msra.mxu0 %v552
    %562 = vmatpush.bf16.msra.mxu0 %v551
    %563 = vmatpush.bf16.msra.mxu0 %v550
    %564 = vmatpush.bf16.msra.mxu0 %v549
    %565 = vmatpush.bf16.msra.mxu0 %v548
    %566 = vmatpush.bf16.msra.mxu0 %v547
    %567 = vmatpush.bf16.msra.mxu0 %v546
    %568 = vmatpush.bf16.msra.mxu0 %v545
    %569 = vmatmul.bf16.gmra.mxu0 %v492
    %v570 = vpop.f32.mrf.mxu0
    %v571 = vadd.f32 0.0, %v570
    %v572 = vpop.f32.mrf.mxu0
    %573 = vdwg.mxu0
    %v574 = vadd.f32 %v496, %v571
    %v575 = vtanh.pop %v574
    %v576 = vpack.c.bf16 %v575, %v575
    %s577 = scalar_lea.vmem [#allocation13], 8
    %578 = vst [vmem:[%s577] sm:$0xf] %v576
    %s579 = scalar_lea.vmem [#allocation2], 24
    %v580 = vld [vmem:[%s579] sm:$0xff]
    %v581 = vld [vmem:[#allocation12] sm:$0xf]
    %v582 = vld [vmem:[#allocation12 + $0x4] sm:$0xf]
    %v583 = vld [vmem:[#allocation12 + $0x8] sm:$0xf]
    %v584 = vld [vmem:[#allocation12 + $0xc] sm:$0xf]
    %v585 = vld [vmem:[#allocation12 + $0x10] sm:$0xf]
    %v586 = vld [vmem:[#allocation12 + $0x14] sm:$0xf]
    %v587 = vld [vmem:[#allocation12 + $0x18] sm:$0xf]
    %v588 = vld [vmem:[#allocation12 + $0x1c] sm:$0xf]
    %v589 = vld [vmem:[#allocation12 + $0x20] sm:$0xf]
    %v590 = vld [vmem:[#allocation12 + $0x24] sm:$0xf]
    %v591 = vld [vmem:[#allocation12 + $0x28] sm:$0xf]
    %v592 = vld [vmem:[#allocation12 + $0x2c] sm:$0xf]
    %v593 = vld [vmem:[#allocation12 + $0x30] sm:$0xf]
    %v594 = vld [vmem:[#allocation12 + $0x34] sm:$0xf]
    %v595 = vld [vmem:[#allocation12 + $0x38] sm:$0xf]
    %v596 = vld [vmem:[#allocation12 + $0x3c] sm:$0xf]
    %v613 = vunpack.c.l.b16 %v581
    %v614 = vunpack.c.l.b16 %v582
    %v615 = vunpack.c.l.b16 %v583
    %v616 = vunpack.c.l.b16 %v584
    %v617 = vunpack.c.l.b16 %v585
    %v618 = vunpack.c.l.b16 %v586
    %v619 = vunpack.c.l.b16 %v587
    %v620 = vunpack.c.l.b16 %v588
    %v621 = vunpack.c.l.b16 %v589
    %v622 = vunpack.c.l.b16 %v590
    %v623 = vunpack.c.l.b16 %v591
    %v624 = vunpack.c.l.b16 %v592
    %v625 = vunpack.c.l.b16 %v593
    %v626 = vunpack.c.l.b16 %v594
    %v627 = vunpack.c.l.b16 %v595
    %v628 = vunpack.c.l.b16 %v596
    %v629 = vpack.c.b16 %v614, %v613
    %v630 = vpack.c.b16 %v616, %v615
    %v631 = vpack.c.b16 %v618, %v617
    %v632 = vpack.c.b16 %v620, %v619
    %v633 = vpack.c.b16 %v622, %v621
    %v634 = vpack.c.b16 %v624, %v623
    %v635 = vpack.c.b16 %v626, %v625
    %v636 = vpack.c.b16 %v628, %v627
    %645 = vmatpush.bf16.msra.mxu0 %v636
    %646 = vmatpush.bf16.msra.mxu0 %v635
    %647 = vmatpush.bf16.msra.mxu0 %v634
    %648 = vmatpush.bf16.msra.mxu0 %v633
    %649 = vmatpush.bf16.msra.mxu0 %v632
    %650 = vmatpush.bf16.msra.mxu0 %v631
    %651 = vmatpush.bf16.msra.mxu0 %v630
    %652 = vmatpush.bf16.msra.mxu0 %v629
    %653 = vmatmul.bf16.gmra.mxu0 %v576
    %v654 = vpop.f32.mrf.mxu0
    %v655 = vadd.f32 0.0, %v654
    %v656 = vpop.f32.mrf.mxu0
    %657 = vdwg.mxu0
    %v658 = vadd.f32 %v580, %v655
    %v659 = vtanh.pop %v658
    %v660 = vpack.c.bf16 %v659, %v659
    %s661 = scalar_lea.vmem [#allocation13], 12
    %662 = vst [vmem:[%s661] sm:$0xf] %v660
    %s663 = scalar_lea.vmem [#allocation2], 32
    %v664 = vld [vmem:[%s663] sm:$0xff]
    %v665 = vld [vmem:[#allocation12] sm:$0xf]
    %v666 = vld [vmem:[#allocation12 + $0x4] sm:$0xf]
    %v667 = vld [vmem:[#allocation12 + $0x8] sm:$0xf]
    %v668 = vld [vmem:[#allocation12 + $0xc] sm:$0xf]
    %v669 = vld [vmem:[#allocation12 + $0x10] sm:$0xf]
    %v670 = vld [vmem:[#allocation12 + $0x14] sm:$0xf]
    %v671 = vld [vmem:[#allocation12 + $0x18] sm:$0xf]
    %v672 = vld [vmem:[#allocation12 + $0x1c] sm:$0xf]
    %v673 = vld [vmem:[#allocation12 + $0x20] sm:$0xf]
    %v674 = vld [vmem:[#allocation12 + $0x24] sm:$0xf]
    %v675 = vld [vmem:[#allocation12 + $0x28] sm:$0xf]
    %v676 = vld [vmem:[#allocation12 + $0x2c] sm:$0xf]
    %v677 = vld [vmem:[#allocation12 + $0x30] sm:$0xf]
    %v678 = vld [vmem:[#allocation12 + $0x34] sm:$0xf]
    %v679 = vld [vmem:[#allocation12 + $0x38] sm:$0xf]
    %v680 = vld [vmem:[#allocation12 + $0x3c] sm:$0xf]
    %v697 = vunpack.c.l.b16 %v665
    %v698 = vunpack.c.l.b16 %v666
    %v699 = vunpack.c.l.b16 %v667
    %v700 = vunpack.c.l.b16 %v668
    %v701 = vunpack.c.l.b16 %v669
    %v702 = vunpack.c.l.b16 %v670
    %v703 = vunpack.c.l.b16 %v671
    %v704 = vunpack.c.l.b16 %v672
    %v705 = vunpack.c.l.b16 %v673
    %v706 = vunpack.c.l.b16 %v674
    %v707 = vunpack.c.l.b16 %v675
    %v708 = vunpack.c.l.b16 %v676
    %v709 = vunpack.c.l.b16 %v677
    %v710 = vunpack.c.l.b16 %v678
    %v711 = vunpack.c.l.b16 %v679
    %v712 = vunpack.c.l.b16 %v680
    %v713 = vpack.c.b16 %v698, %v697
    %v714 = vpack.c.b16 %v700, %v699
    %v715 = vpack.c.b16 %v702, %v701
    %v716 = vpack.c.b16 %v704, %v703
    %v717 = vpack.c.b16 %v706, %v705
    %v718 = vpack.c.b16 %v708, %v707
    %v719 = vpack.c.b16 %v710, %v709
    %v720 = vpack.c.b16 %v712, %v711
    %729 = vmatpush.bf16.msra.mxu0 %v720
    %730 = vmatpush.bf16.msra.mxu0 %v719
    %731 = vmatpush.bf16.msra.mxu0 %v718
    %732 = vmatpush.bf16.msra.mxu0 %v717
    %733 = vmatpush.bf16.msra.mxu0 %v716
    %734 = vmatpush.bf16.msra.mxu0 %v715
    %735 = vmatpush.bf16.msra.mxu0 %v714
    %736 = vmatpush.bf16.msra.mxu0 %v713
    %737 = vmatmul.bf16.gmra.mxu0 %v660
    %v738 = vpop.f32.mrf.mxu0
    %v739 = vadd.f32 0.0, %v738
    %v740 = vpop.f32.mrf.mxu0
    %741 = vdwg.mxu0
    %v742 = vadd.f32 %v664, %v739
    %v743 = vtanh.pop %v742
    %v744 = vpack.c.bf16 %v743, %v743
    %s745 = scalar_lea.vmem [#allocation13], 16
    %746 = vst [vmem:[%s745] sm:$0xf] %v744
    %s747 = scalar_lea.vmem [#allocation2], 40
    %v748 = vld [vmem:[%s747] sm:$0xff]
    %v749 = vld [vmem:[#allocation12] sm:$0xf]
    %v750 = vld [vmem:[#allocation12 + $0x4] sm:$0xf]
    %v751 = vld [vmem:[#allocation12 + $0x8] sm:$0xf]
    %v752 = vld [vmem:[#allocation12 + $0xc] sm:$0xf]
    %v753 = vld [vmem:[#allocation12 + $0x10] sm:$0xf]
    %v754 = vld [vmem:[#allocation12 + $0x14] sm:$0xf]
    %v755 = vld [vmem:[#allocation12 + $0x18] sm:$0xf]
    %v756 = vld [vmem:[#allocation12 + $0x1c] sm:$0xf]
    %v757 = vld [vmem:[#allocation12 + $0x20] sm:$0xf]
    %v758 = vld [vmem:[#allocation12 + $0x24] sm:$0xf]
    %v759 = vld [vmem:[#allocation12 + $0x28] sm:$0xf]
    %v760 = vld [vmem:[#allocation12 + $0x2c] sm:$0xf]
    %v761 = vld [vmem:[#allocation12 + $0x30] sm:$0xf]
    %v762 = vld [vmem:[#allocation12 + $0x34] sm:$0xf]
    %v763 = vld [vmem:[#allocation12 + $0x38] sm:$0xf]
    %v764 = vld [vmem:[#allocation12 + $0x3c] sm:$0xf]
    %v781 = vunpack.c.l.b16 %v749
    %v782 = vunpack.c.l.b16 %v750
    %v783 = vunpack.c.l.b16 %v751
    %v784 = vunpack.c.l.b16 %v752
    %v785 = vunpack.c.l.b16 %v753
    %v786 = vunpack.c.l.b16 %v754
    %v787 = vunpack.c.l.b16 %v755
    %v788 = vunpack.c.l.b16 %v756
    %v789 = vunpack.c.l.b16 %v757
    %v790 = vunpack.c.l.b16 %v758
    %v791 = vunpack.c.l.b16 %v759
    %v792 = vunpack.c.l.b16 %v760
    %v793 = vunpack.c.l.b16 %v761
    %v794 = vunpack.c.l.b16 %v762
    %v795 = vunpack.c.l.b16 %v763
    %v796 = vunpack.c.l.b16 %v764
    %v797 = vpack.c.b16 %v782, %v781
    %v798 = vpack.c.b16 %v784, %v783
    %v799 = vpack.c.b16 %v786, %v785
    %v800 = vpack.c.b16 %v788, %v787
    %v801 = vpack.c.b16 %v790, %v789
    %v802 = vpack.c.b16 %v792, %v791
    %v803 = vpack.c.b16 %v794, %v793
    %v804 = vpack.c.b16 %v796, %v795
    %813 = vmatpush.bf16.msra.mxu0 %v804
    %814 = vmatpush.bf16.msra.mxu0 %v803
    %815 = vmatpush.bf16.msra.mxu0 %v802
    %816 = vmatpush.bf16.msra.mxu0 %v801
    %817 = vmatpush.bf16.msra.mxu0 %v800
    %818 = vmatpush.bf16.msra.mxu0 %v799
    %819 = vmatpush.bf16.msra.mxu0 %v798
    %820 = vmatpush.bf16.msra.mxu0 %v797
    %821 = vmatmul.bf16.gmra.mxu0 %v744
    %v822 = vpop.f32.mrf.mxu0
    %v823 = vadd.f32 0.0, %v822
    %v824 = vpop.f32.mrf.mxu0
    %825 = vdwg.mxu0
    %v826 = vadd.f32 %v748, %v823
    %v827 = vtanh.pop %v826
    %v828 = vpack.c.bf16 %v827, %v827
    %s829 = scalar_lea.vmem [#allocation13], 20
    %830 = vst [vmem:[%s829] sm:$0xf] %v828
    %s831 = scalar_lea.vmem [#allocation2], 48
    %v832 = vld [vmem:[%s831] sm:$0xff]
    %v833 = vld [vmem:[#allocation12] sm:$0xf]
    %v834 = vld [vmem:[#allocation12 + $0x4] sm:$0xf]
    %v835 = vld [vmem:[#allocation12 + $0x8] sm:$0xf]
    %v836 = vld [vmem:[#allocation12 + $0xc] sm:$0xf]
    %v837 = vld [vmem:[#allocation12 + $0x10] sm:$0xf]
    %v838 = vld [vmem:[#allocation12 + $0x14] sm:$0xf]
    %v839 = vld [vmem:[#allocation12 + $0x18] sm:$0xf]
    %v840 = vld [vmem:[#allocation12 + $0x1c] sm:$0xf]
    %v841 = vld [vmem:[#allocation12 + $0x20] sm:$0xf]
    %v842 = vld [vmem:[#allocation12 + $0x24] sm:$0xf]
    %v843 = vld [vmem:[#allocation12 + $0x28] sm:$0xf]
    %v844 = vld [vmem:[#allocation12 + $0x2c] sm:$0xf]
    %v845 = vld [vmem:[#allocation12 + $0x30] sm:$0xf]
    %v846 = vld [vmem:[#allocation12 + $0x34] sm:$0xf]
    %v847 = vld [vmem:[#allocation12 + $0x38] sm:$0xf]
    %v848 = vld [vmem:[#allocation12 + $0x3c] sm:$0xf]
    %v865 = vunpack.c.l.b16 %v833
    %v866 = vunpack.c.l.b16 %v834
    %v867 = vunpack.c.l.b16 %v835
    %v868 = vunpack.c.l.b16 %v836
    %v869 = vunpack.c.l.b16 %v837
    %v870 = vunpack.c.l.b16 %v838
    %v871 = vunpack.c.l.b16 %v839
    %v872 = vunpack.c.l.b16 %v840
    %v873 = vunpack.c.l.b16 %v841
    %v874 = vunpack.c.l.b16 %v842
    %v875 = vunpack.c.l.b16 %v843
    %v876 = vunpack.c.l.b16 %v844
    %v877 = vunpack.c.l.b16 %v845
    %v878 = vunpack.c.l.b16 %v846
    %v879 = vunpack.c.l.b16 %v847
    %v880 = vunpack.c.l.b16 %v848
    %v881 = vpack.c.b16 %v866, %v865
    %v882 = vpack.c.b16 %v868, %v867
    %v883 = vpack.c.b16 %v870, %v869
    %v884 = vpack.c.b16 %v872, %v871
    %v885 = vpack.c.b16 %v874, %v873
    %v886 = vpack.c.b16 %v876, %v875
    %v887 = vpack.c.b16 %v878, %v877
    %v888 = vpack.c.b16 %v880, %v879
    %897 = vmatpush.bf16.msra.mxu0 %v888
    %898 = vmatpush.bf16.msra.mxu0 %v887
    %899 = vmatpush.bf16.msra.mxu0 %v886
    %900 = vmatpush.bf16.msra.mxu0 %v885
    %901 = vmatpush.bf16.msra.mxu0 %v884
    %902 = vmatpush.bf16.msra.mxu0 %v883
    %903 = vmatpush.bf16.msra.mxu0 %v882
    %904 = vmatpush.bf16.msra.mxu0 %v881
    %905 = vmatmul.bf16.gmra.mxu0 %v828
    %v906 = vpop.f32.mrf.mxu0
    %v907 = vadd.f32 0.0, %v906
    %v908 = vpop.f32.mrf.mxu0
    %909 = vdwg.mxu0
    %v910 = vadd.f32 %v832, %v907
    %v911 = vtanh.pop %v910
    %v912 = vpack.c.bf16 %v911, %v911
    %s913 = scalar_lea.vmem [#allocation13], 24
    %914 = vst [vmem:[%s913] sm:$0xf] %v912
    %s915 = scalar_lea.vmem [#allocation2], 56
    %v916 = vld [vmem:[%s915] sm:$0xff]
    %v917 = vld [vmem:[#allocation12] sm:$0xf]
    %v918 = vld [vmem:[#allocation12 + $0x4] sm:$0xf]
    %v919 = vld [vmem:[#allocation12 + $0x8] sm:$0xf]
    %v920 = vld [vmem:[#allocation12 + $0xc] sm:$0xf]
    %v921 = vld [vmem:[#allocation12 + $0x10] sm:$0xf]
    %v922 = vld [vmem:[#allocation12 + $0x14] sm:$0xf]
    %v923 = vld [vmem:[#allocation12 + $0x18] sm:$0xf]
    %v924 = vld [vmem:[#allocation12 + $0x1c] sm:$0xf]
    %v925 = vld [vmem:[#allocation12 + $0x20] sm:$0xf]
    %v926 = vld [vmem:[#allocation12 + $0x24] sm:$0xf]
    %v927 = vld [vmem:[#allocation12 + $0x28] sm:$0xf]
    %v928 = vld [vmem:[#allocation12 + $0x2c] sm:$0xf]
    %v929 = vld [vmem:[#allocation12 + $0x30] sm:$0xf]
    %v930 = vld [vmem:[#allocation12 + $0x34] sm:$0xf]
    %v931 = vld [vmem:[#allocation12 + $0x38] sm:$0xf]
    %v932 = vld [vmem:[#allocation12 + $0x3c] sm:$0xf]
    %v949 = vunpack.c.l.b16 %v917
    %v950 = vunpack.c.l.b16 %v918
    %v951 = vunpack.c.l.b16 %v919
    %v952 = vunpack.c.l.b16 %v920
    %v953 = vunpack.c.l.b16 %v921
    %v954 = vunpack.c.l.b16 %v922
    %v955 = vunpack.c.l.b16 %v923
    %v956 = vunpack.c.l.b16 %v924
    %v957 = vunpack.c.l.b16 %v925
    %v958 = vunpack.c.l.b16 %v926
    %v959 = vunpack.c.l.b16 %v927
    %v960 = vunpack.c.l.b16 %v928
    %v961 = vunpack.c.l.b16 %v929
    %v962 = vunpack.c.l.b16 %v930
    %v963 = vunpack.c.l.b16 %v931
    %v964 = vunpack.c.l.b16 %v932
    %v965 = vpack.c.b16 %v950, %v949
    %v966 = vpack.c.b16 %v952, %v951
    %v967 = vpack.c.b16 %v954, %v953
    %v968 = vpack.c.b16 %v956, %v955
    %v969 = vpack.c.b16 %v958, %v957
    %v970 = vpack.c.b16 %v960, %v959
    %v971 = vpack.c.b16 %v962, %v961
    %v972 = vpack.c.b16 %v964, %v963
    %981 = vmatpush.bf16.msra.mxu0 %v972
    %982 = vmatpush.bf16.msra.mxu0 %v971
    %983 = vmatpush.bf16.msra.mxu0 %v970
    %984 = vmatpush.bf16.msra.mxu0 %v969
    %985 = vmatpush.bf16.msra.mxu0 %v968
    %986 = vmatpush.bf16.msra.mxu0 %v967
    %987 = vmatpush.bf16.msra.mxu0 %v966
    %988 = vmatpush.bf16.msra.mxu0 %v965
    %989 = vmatmul.bf16.gmra.mxu0 %v912
    %v990 = vpop.f32.mrf.mxu0
    %v991 = vadd.f32 0.0, %v990
    %v992 = vpop.f32.mrf.mxu0
    %993 = vdwg.mxu0
    %v994 = vadd.f32 %v916, %v991
    %v995 = vtanh.pop %v994
    %v996 = vpack.c.bf16 %v995, %v995
    %s997 = scalar_lea.vmem [#allocation13], 28
    %998 = vst [vmem:[%s997] sm:$0xf] %v996
    %999 = vst [vmem:[#allocation3] sm:$0xff] %v995
    // Predicated region
    $region54: #{tpu_custom_call.1} parent=1 // pred_check
      _
    $region55: #{tpu_custom_call.1} parent=1 // pred_check_branch
      %1001 = sbr.rel (0) target = $region57
    $region56: #{tpu_custom_call.1} parent=1 // pred_region
      %1003 = vsyncadd [#allocation6], 0
      %s1004 = sshll.u32 [#allocation13], 4
      %s1005 = int_to_ptr.vmem [resolvable:$true] %s1004
      %s1006 = sshll.u32 %s7, 4
      %s1007 = int_to_ptr.hbm [resolvable:$true] %s1006
      %1012 = dma.vmem_to_hbm [thread:$0]  %s1005, 512, %s1007, [#allocation6], 64, 64, 4
    $region57: #{tpu_custom_call.1} parent=1 // pred_fallthru
      _
    // Predicated region
    $region58: #{tpu_custom_call.1} parent=1 // pred_check
      _
    $region59: #{tpu_custom_call.1} parent=1 // pred_check_branch
      %1014 = sbr.rel (0) target = $region61
    $region60: #{tpu_custom_call.1} parent=1 // pred_region
      %1016 = dma.done [#allocation6], 512
    $region61: #{tpu_custom_call.1} parent=1 // pred_fallthru
      _
    %1017 = vsyncpa [#allocation5], 1
    %1018 = vsyncpa [#allocation8], 1
    %1019 = vsyncpa [#allocation11], 1
    %1020 = vsyncpa [#allocation6], 1

</llo_original>
